<compile_context>
chip_gen: v5e
topology: v5e:2x2
jax: 0.10.0
libtpu: 0.0.40
codegen_flags: <defaults>
</compile_context>

<pallas_src>
import functools

import jax
import jax.numpy as jnp
from jax import lax
from jax.experimental import pallas as pl
from jax.experimental.pallas import tpu as pltpu


_MASK_VALUE = -0.7 * float(jnp.finfo(jnp.float32).max)


def _round_up(x, m):
    return ((x + m - 1) // m) * m


def _cdiv(a, b):
    return (a + b - 1) // b


@functools.lru_cache(maxsize=1)
def _vmem_capacity_bytes():
    """Physical per-core VMEM bytes (128 MiB v5e/v6e, 64 MiB v7x)."""
    cap = 64 << 20  # conservative fallback = v7x per-TensorCore VMEM
    try:
        cap = int(pltpu.get_tpu_info().vmem_capacity_bytes)
    except Exception:
        pass
    return cap


def _cross_attention_body(q_ref, ctx_ref, w_in_ref, w_om_ref, w_oq_ref,
                          out_ref, attn_ref, *, s_actual, mxu_dtype):
    # q_ref:    (TB, BL, Dp)  query block (TB batch x BL query rows per step)
    # ctx_ref:  (TB, Sp, Dp)  context block (constant across the L grid axis)
    # w_in_ref: (Dp, Dp)      = W_in^T  (x @ w_in_ref == x @ W_in^T), bf16
    # w_om_ref: (Dp, Dp)      = W_out[:, :D]^T  (multiplies `mix`), bf16
    # w_oq_ref: (Dp, Dp)      = W_out[:, D:]^T  (multiplies `q`), bf16
    # out_ref:  (TB, BL, Dp)
    # attn_ref: (TB, BL, Sp) or None (attn store skipped entirely)
    tb, bl, dpad = q_ref.shape
    spad = ctx_ref.shape[1]

    ctx = ctx_ref[...].astype(mxu_dtype)                         # (TB, Sp, Dp)

    # linear_in over all TB*BL rows in a single MXU matmul (large M).
    q_in = q_ref[...].reshape(tb * bl, dpad).astype(mxu_dtype)
    q2 = jnp.dot(q_in, w_in_ref[...],
                 preferred_element_type=jnp.float32)             # f32 acc
    q2_m = q2.astype(mxu_dtype)                                  # reused below

    # attention scores: contract the shared feature dim directly (no explicit
    # context^T materialized before the MXU push).
    scores = lax.dot_general(
        q2_m.reshape(tb, bl, dpad), ctx,
        dimension_numbers=(((2,), (2,)), ((0,), (0,))),
        preferred_element_type=jnp.float32)                      # (TB, BL, Sp)

    # Mask lane-padded context rows out of the softmax (static check).
    if s_actual < spad:
        col = lax.broadcasted_iota(jnp.int32, scores.shape, 2)
        scores = jnp.where(col < s_actual, scores, _MASK_VALUE)

    # numerically-stable softmax; reciprocal on the EUP instead of a VALU
    # divide, plus one Newton step to retain f32 accuracy.
    m = jnp.max(scores, axis=-1, keepdims=True)
    e = jnp.exp(scores - m)
    denom = jnp.sum(e, axis=-1, keepdims=True)
    inv = pl.reciprocal(denom, approx=True)
    inv = inv * (2.0 - denom * inv)
    attn = e * inv                                               # f32

    if attn_ref is not None:
        attn_ref[...] = attn.astype(attn_ref.dtype)              # bf16 default

    # mix = attn @ context (batched), bf16 operands, f32 accumulation.
    mix = lax.dot_general(
        attn.astype(mxu_dtype), ctx,
        dimension_numbers=(((2,), (1,)), ((0,), (0,))),
        preferred_element_type=jnp.float32)                      # (TB, BL, Dp)

    # linear_out on cat([mix, q], -1) == mix @ W_om^T + q @ W_oq^T, pre-split.
    out = (jnp.dot(mix.reshape(tb * bl, dpad).astype(mxu_dtype), w_om_ref[...],
                   preferred_element_type=jnp.float32)
           + jnp.dot(q2_m, w_oq_ref[...],
                     preferred_element_type=jnp.float32))        # (TB*BL, Dp)

    out_ref[...] = jnp.tanh(out).reshape(tb, bl, dpad).astype(out_ref.dtype)


def _kernel_with_attn(q_ref, ctx_ref, w_in_ref, w_om_ref, w_oq_ref,
                      out_ref, attn_ref, *, s_actual, mxu_dtype):
    _cross_attention_body(q_ref, ctx_ref, w_in_ref, w_om_ref, w_oq_ref,
                          out_ref, attn_ref, s_actual=s_actual,
                          mxu_dtype=mxu_dtype)


def _kernel_no_attn(q_ref, ctx_ref, w_in_ref, w_om_ref, w_oq_ref,
                    out_ref, *, s_actual, mxu_dtype):
    _cross_attention_body(q_ref, ctx_ref, w_in_ref, w_om_ref, w_oq_ref,
                          out_ref, None, s_actual=s_actual, mxu_dtype=mxu_dtype)


@functools.partial(
    jax.jit,
    static_argnames=("block_b", "block_l", "return_attn", "attn_dtype",
                     "use_bf16_mxu", "lane_pad"))
def cross_attention(query, context, w_in, w_out, *, block_b=None, block_l=None,
                    return_attn=True, attn_dtype=jnp.bfloat16,
                    use_bf16_mxu=True, lane_pad=True):
    """query: (B, L, D), context: (B, S, D)
    w_in:  (D, D)  PyTorch nn.Linear weight (out, in), bias=False
    w_out: (D, 2D) PyTorch nn.Linear weight (out, in), bias=False
    Returns (output (B, L, D), attention_weights (B, L, S) or None)."""
    B, L, D = query.shape
    S = context.shape[1]

    in_elt = jnp.dtype(query.dtype).itemsize
    out_elt = in_elt
    mxu_dtype = jnp.bfloat16 if use_bf16_mxu else query.dtype
    w_elt = jnp.dtype(mxu_dtype).itemsize
    attn_elt = jnp.dtype(attn_dtype).itemsize if return_attn else 0
    sublane = max(8, 32 // in_elt)          # 8 for f32, 16 for bf16 inputs

    # Lane-dense stored last dims (multiple of 128) -> unmasked vst; padded
    # context rows are masked out of the softmax inside the kernel.
    D_pad = _round_up(D, 128) if lane_pad else D
    S_pad = _round_up(S, 128) if lane_pad else S
    L_al = _round_up(L, sublane)            # free (8,128)-aligned reshapes

    # Generation-aware VMEM budget (~54 MiB on v7x, ~109 MiB on v5e/v6e).
    cap = _vmem_capacity_bytes()
    budget = int(cap * 0.85)

    def _per_step_bytes(bb_, bl_):
        q_b = bb_ * bl_ * D_pad * in_elt
        c_b = bb_ * S_pad * D_pad * in_elt
        w_b = 3 * D_pad * D_pad * w_elt
        o_b = bb_ * bl_ * D_pad * out_elt
        a_b = bb_ * bl_ * S_pad * attn_elt
        pipelined = 2 * (q_b + c_b + w_b + o_b + a_b)   # double-buffered once
        # f32 scores/exp/attn + f32 q/mix/out temporaries + bf16 operand copies.
        temps = bb_ * bl_ * (3 * S_pad + 3 * D_pad) * 4 + (q_b + c_b + a_b)
        return pipelined + temps + (2 << 20)

    # L tile: biggest (sublane-aligned) tile that fits the budget at block_b=1.
    if block_l is not None:
        bl = min(_round_up(block_l, sublane), L_al)
    else:
        bl = L_al
        while bl > sublane and _per_step_bytes(1, bl) > budget:
            bl = _round_up(max(bl // 2, sublane), sublane)
        # TODO(synk): if even (1, sublane) does not fit, S-tiling with an
        # online softmax is required; not implemented here.
    n_l = _cdiv(L, bl)

    # Batch tile: biggest that fits; then prefer an even total grid-step count
    # (v7x has 2 TensorCores sharing the "parallel" axes) as long as it costs
    # at most ~12.5% extra batch padding.
    if block_b is None:
        bb = 1
        for cand in range(min(B, 128), 0, -1):
            if _per_step_bytes(cand, bl) <= budget:
                bb = cand
                break
        if (_cdiv(B, bb) * n_l) % 2 == 1:
            pad_cap = max(_cdiv(B, bb) * bb, _cdiv(9 * B, 8))
            for cand in range(bb - 1, 0, -1):
                padded = _cdiv(B, cand) * cand
                if padded <= pad_cap and (_cdiv(B, cand) * n_l) % 2 == 0:
                    bb = cand
                    break
    else:
        bb = max(1, min(block_b, B))

    B_pad = _cdiv(B, bb) * bb
    L_padT = n_l * bl

    # Pad activations (zero rows produce a finite uniform softmax over the
    # real context positions and are sliced off below).
    qp = ((0, B_pad - B), (0, L_padT - L), (0, D_pad - D))
    cp = ((0, B_pad - B), (0, S_pad - S), (0, D_pad - D))
    query_p = jnp.pad(query, qp) if any(p[1] for p in qp) else query
    context_p = jnp.pad(context, cp) if any(p[1] for p in cp) else context

    # Pre-pad / pre-transpose / pre-split / pre-cast weights so the kernel does
    # plain bf16 x @ W and never slices a loaded array.
    def _prep_w(w):  # (D, D) torch layout (out, in) -> (Dp, Dp) transposed
        if D_pad != D:
            w = jnp.pad(w, ((0, D_pad - D), (0, D_pad - D)))
        return w.T.astype(mxu_dtype)

    w_in_t = _prep_w(w_in)                # multiplies query      (linear_in)
    w_om_t = _prep_w(w_out[:, :D])        # multiplies `mix`      (linear_out)
    w_oq_t = _prep_w(w_out[:, D:])        # multiplies `q`        (linear_out)

    grid = (B_pad // bb, L_padT // bl)

    in_specs = [
        pl.BlockSpec((bb, bl, D_pad), lambda b, l: (b, l, 0)),    # query
        pl.BlockSpec((bb, S_pad, D_pad), lambda b, l: (b, 0, 0)),  # context
        pl.BlockSpec((D_pad, D_pad), lambda b, l: (0, 0)),         # W_in^T
        pl.BlockSpec((D_pad, D_pad), lambda b, l: (0, 0)),         # W_om^T
        pl.BlockSpec((D_pad, D_pad), lambda b, l: (0, 0)),         # W_oq^T
    ]
    out_spec_o = pl.BlockSpec((bb, bl, D_pad), lambda b, l: (b, l, 0))
    out_shape_o = jax.ShapeDtypeStruct((B_pad, L_padT, D_pad), query.dtype)

    needed = _per_step_bytes(bb, bl)
    vmem_limit = None
    if needed > (32 << 20):
        vmem_limit = int(min(int(cap * 0.9),
                             needed + max(needed // 4, 4 << 20)))

    compiler_params = pltpu.CompilerParams(
        dimension_semantics=("parallel", "parallel"),
        vmem_limit_bytes=vmem_limit)

    if return_attn:
        kernel = functools.partial(_kernel_with_attn, s_actual=S,
                                   mxu_dtype=mxu_dtype)
        out_shape = (out_shape_o,
                     jax.ShapeDtypeStruct((B_pad, L_padT, S_pad), attn_dtype))
        out_specs = [out_spec_o,
                     pl.BlockSpec((bb, bl, S_pad), lambda b, l: (b, l, 0))]
        out_p, attn_p = pl.pallas_call(
            kernel, out_shape=out_shape,
            grid_spec=pltpu.PrefetchScalarGridSpec(
                num_scalar_prefetch=0, grid=grid,
                in_specs=in_specs, out_specs=out_specs),
            compiler_params=compiler_params,
        )(query_p, context_p, w_in_t, w_om_t, w_oq_t)
        return out_p[:B, :L, :D], attn_p[:B, :L, :S]
    else:
        kernel = functools.partial(_kernel_no_attn, s_actual=S,
                                   mxu_dtype=mxu_dtype)
        out_p = pl.pallas_call(
            kernel, out_shape=out_shape_o,
            grid_spec=pltpu.PrefetchScalarGridSpec(
                num_scalar_prefetch=0, grid=grid,
                in_specs=in_specs, out_specs=out_spec_o),
            compiler_params=compiler_params,
        )(query_p, context_p, w_in_t, w_om_t, w_oq_t)
        return out_p[:B, :L, :D], None


def cross_attention_ref(query, context, w_in, w_out):
    """Pure-JAX f32 reference mirroring the PyTorch forward."""
    q = jnp.einsum("bld,ed->ble", query, w_in)                    # linear_in
    scores = jnp.einsum("bld,bsd->bls", q, context)
    attn = jax.nn.softmax(scores, axis=-1)
    mix = jnp.einsum("bls,bsd->bld", attn, context)
    combined = jnp.concatenate([mix, q], axis=-1)
    out = jnp.tanh(jnp.einsum("blc,ec->ble", combined, w_out))    # linear_out
    return out, attn


if __name__ == "__main__":
    B, L, S, D = 8, 8, 8, 32   # batch, output_len, query_len (context), dims

    key = jax.random.PRNGKey(0)
    k1, k2, k3, k4 = jax.random.split(key, 4)
    query = jax.random.normal(k1, (B, L, D), dtype=jnp.float32)
    context = jax.random.normal(k2, (B, S, D), dtype=jnp.float32)
    # nn.Linear weights: (out_features, in_features), bias=False
    w_in = jax.random.normal(k3, (D, D), dtype=jnp.float32) * 0.1
    w_out = jax.random.normal(k4, (D, 2 * D), dtype=jnp.float32) * 0.1

    out_ref, attn_ref = cross_attention_ref(query, context, w_in, w_out)

    # Default fast path: bf16 MXU operands + bf16 attn writeback.
    out, attn = cross_attention(query, context, w_in, w_out)
    out = jax.block_until_ready(out)
    attn = jax.block_until_ready(attn)
    assert out.shape == (B, L, D) and attn.shape == (B, L, S)
    assert jnp.allclose(out, out_ref, atol=1e-1, rtol=1e-1)
    assert jnp.allclose(attn.astype(jnp.float32), attn_ref, atol=1e-1, rtol=1e-1)

    # Tight structural check: f32 MXU operands, f32 attn (padding/masking path).
    out32, attn32 = cross_attention(query, context, w_in, w_out,
                                    use_bf16_mxu=False,
                                    attn_dtype=jnp.float32)
    out32 = jax.block_until_ready(out32)
    assert jnp.allclose(out32, out_ref, atol=1e-3, rtol=1e-3)
    assert jnp.allclose(attn32, attn_ref, atol=1e-3, rtol=1e-3)

    # attn writeback can be skipped entirely when it is not consumed.
    out_na, attn_na = cross_attention(query, context, w_in, w_out,
                                      return_attn=False)
    out_na = jax.block_until_ready(out_na)
    assert attn_na is None
    assert jnp.allclose(out_na, out, atol=1e-5, rtol=1e-5)

    print("KERNEL_OK")
</pallas_src>

<mosaic_0001>
module attributes {stable_mosaic.version = 11 : i64} {
  func.func @_kernel_with_attn(%arg0: i32, %arg1: i32, %arg2: memref<4x8x128xf32, #tpu.memory_space<vmem>>, %arg3: memref<4x128x128xf32, #tpu.memory_space<vmem>>, %arg4: memref<128x128xbf16, #tpu.memory_space<vmem>>, %arg5: memref<128x128xbf16, #tpu.memory_space<vmem>>, %arg6: memref<128x128xbf16, #tpu.memory_space<vmem>>, %arg7: memref<4x8x128xf32, #tpu.memory_space<vmem>>, %arg8: memref<4x8x128xbf16, #tpu.memory_space<vmem>>) attributes {dimension_semantics = [#tpu.dimension_semantics<parallel>, #tpu.dimension_semantics<parallel>], iteration_bounds = array<i64: 2, 1>, scalar_prefetch = 0 : i64, scratch_operands = 0 : i64, tpu.core_type = #tpu.core_type<tc>, window_params = [{transform_indices = @transform_0, window_bounds = array<i64: 4, 8, 128>}, {transform_indices = @transform_1, window_bounds = array<i64: 4, 128, 128>}, {pipeline_mode = #tpu.pipeline_mode<synchronous>, transform_indices = @transform_2, window_bounds = array<i64: 128, 128>}, {pipeline_mode = #tpu.pipeline_mode<synchronous>, transform_indices = @transform_3, window_bounds = array<i64: 128, 128>}, {pipeline_mode = #tpu.pipeline_mode<synchronous>, transform_indices = @transform_4, window_bounds = array<i64: 128, 128>}, {transform_indices = @transform_5, window_bounds = array<i64: 4, 8, 128>}, {transform_indices = @transform_6, window_bounds = array<i64: 4, 8, 128>}]} {
    %c0 = arith.constant 0 : index
    %c0_0 = arith.constant 0 : index
    %c0_1 = arith.constant 0 : index
    %0 = vector.load %arg3[%c0, %c0_0, %c0_1] : memref<4x128x128xf32, #tpu.memory_space<vmem>>, vector<4x128x128xf32>
    %1 = arith.truncf %0 : vector<4x128x128xf32> to vector<4x128x128xbf16>
    %c0_2 = arith.constant 0 : index
    %c0_3 = arith.constant 0 : index
    %c0_4 = arith.constant 0 : index
    %2 = vector.load %arg2[%c0_2, %c0_3, %c0_4] : memref<4x8x128xf32, #tpu.memory_space<vmem>>, vector<4x8x128xf32>
    %3 = vector.shape_cast %2 : vector<4x8x128xf32> to vector<32x128xf32>
    %4 = arith.truncf %3 : vector<32x128xf32> to vector<32x128xbf16>
    %c0_5 = arith.constant 0 : index
    %c0_6 = arith.constant 0 : index
    %5 = vector.load %arg4[%c0_5, %c0_6] : memref<128x128xbf16, #tpu.memory_space<vmem>>, vector<128x128xbf16>
    %cst = arith.constant dense<0.000000e+00> : vector<32x128xf32>
    %6 = tpu.matmul %4, %5, %cst {dimension_numbers = #tpu.dot_dimension_numbers<[1], [0], [0], [1], [0, 0, 1, 1], [], []>} : vector<32x128xbf16>, vector<128x128xbf16>, vector<32x128xf32> -> vector<32x128xf32>
    %7 = arith.truncf %6 : vector<32x128xf32> to vector<32x128xbf16>
    %8 = vector.shape_cast %7 : vector<32x128xbf16> to vector<4x8x128xbf16>
    %cst_7 = arith.constant dense<0.000000e+00> : vector<4x8x128xf32>
    %9 = tpu.matmul %8, %1, %cst_7 {dimension_numbers = #tpu.dot_dimension_numbers<[2], [2], [1], [1], [0, 0, 0, 1, 1, 1], [0], [0]>} : vector<4x8x128xbf16>, vector<4x128x128xbf16>, vector<4x8x128xf32> -> vector<4x8x128xf32>
    %10 = tpu.iota {dimensions = array<i32: 2>} : vector<4x8x128xi32>
    %c8_i32 = arith.constant 8 : i32
    %11 = vector.broadcast %c8_i32 : i32 to vector<4x8x128xi32>
    %12 = arith.cmpi slt, %10, %11 : vector<4x8x128xi32>
    %cst_8 = arith.constant -2.38197633E+38 : f32
    %13 = vector.broadcast %cst_8 : f32 to vector<4x8x128xf32>
    %14 = arith.select %12, %9, %13 : vector<4x8x128xi1>, vector<4x8x128xf32>
    %cst_9 = arith.constant dense<0xFF800000> : vector<4x8xf32>
    %15 = vector.multi_reduction <maximumf>, %14, %cst_9 [2] : vector<4x8x128xf32> to vector<4x8xf32>
    %16 = vector.shape_cast %15 : vector<4x8xf32> to vector<4x8x1xf32>
    %17 = vector.broadcast %16 : vector<4x8x1xf32> to vector<4x8x128xf32>
    %18 = arith.subf %14, %17 : vector<4x8x128xf32>
    %19 = math.exp %18 : vector<4x8x128xf32>
    %cst_10 = arith.constant dense<0.000000e+00> : vector<4x8xf32>
    %20 = vector.multi_reduction <add>, %19, %cst_10 [2] : vector<4x8x128xf32> to vector<4x8xf32>
    %21 = vector.shape_cast %20 : vector<4x8xf32> to vector<4x8x1xf32>
    %22 = tpu.reciprocal %21 {approx = true} : vector<4x8x1xf32> -> vector<4x8x1xf32>
    %23 = arith.mulf %21, %22 : vector<4x8x1xf32>
    %cst_11 = arith.constant 2.000000e+00 : f32
    %24 = vector.broadcast %cst_11 : f32 to vector<4x8x1xf32>
    %25 = arith.subf %24, %23 : vector<4x8x1xf32>
    %26 = arith.mulf %22, %25 : vector<4x8x1xf32>
    %27 = vector.broadcast %26 : vector<4x8x1xf32> to vector<4x8x128xf32>
    %28 = arith.mulf %19, %27 : vector<4x8x128xf32>
    %29 = arith.truncf %28 : vector<4x8x128xf32> to vector<4x8x128xbf16>
    %c0_12 = arith.constant 0 : index
    %c0_13 = arith.constant 0 : index
    %c0_14 = arith.constant 0 : index
    %30 = vector.load %arg8[%c0_12, %c0_13, %c0_14] : memref<4x8x128xbf16, #tpu.memory_space<vmem>>, vector<4x8x128xbf16>
    tpu.vector_store %arg8[%c0_12, %c0_13, %c0_14], %29 {strides = array<i32>} : memref<4x8x128xbf16, #tpu.memory_space<vmem>>, vector<4x8x128xbf16>,
    %31 = arith.truncf %28 : vector<4x8x128xf32> to vector<4x8x128xbf16>
    %cst_15 = arith.constant dense<0.000000e+00> : vector<4x8x128xf32>
    %32 = tpu.matmul %31, %1, %cst_15 {dimension_numbers = #tpu.dot_dimension_numbers<[2], [1], [1], [2], [0, 0, 0, 1, 1, 2], [0], [0]>} : vector<4x8x128xbf16>, vector<4x128x128xbf16>, vector<4x8x128xf32> -> vector<4x8x128xf32>
    %33 = vector.shape_cast %32 : vector<4x8x128xf32> to vector<32x128xf32>
    %34 = arith.truncf %33 : vector<32x128xf32> to vector<32x128xbf16>
    %c0_16 = arith.constant 0 : index
    %c0_17 = arith.constant 0 : index
    %35 = vector.load %arg5[%c0_16, %c0_17] : memref<128x128xbf16, #tpu.memory_space<vmem>>, vector<128x128xbf16>
    %cst_18 = arith.constant dense<0.000000e+00> : vector<32x128xf32>
    %36 = tpu.matmul %34, %35, %cst_18 {dimension_numbers = #tpu.dot_dimension_numbers<[1], [0], [0], [1], [0, 0, 1, 1], [], []>} : vector<32x128xbf16>, vector<128x128xbf16>, vector<32x128xf32> -> vector<32x128xf32>
    %c0_19 = arith.constant 0 : index
    %c0_20 = arith.constant 0 : index
    %37 = vector.load %arg6[%c0_19, %c0_20] : memref<128x128xbf16, #tpu.memory_space<vmem>>, vector<128x128xbf16>
    %cst_21 = arith.constant dense<0.000000e+00> : vector<32x128xf32>
    %38 = tpu.matmul %7, %37, %cst_21 {dimension_numbers = #tpu.dot_dimension_numbers<[1], [0], [0], [1], [0, 0, 1, 1], [], []>} : vector<32x128xbf16>, vector<128x128xbf16>, vector<32x128xf32> -> vector<32x128xf32>
    %39 = arith.addf %36, %38 : vector<32x128xf32>
    %40 = math.tanh %39 : vector<32x128xf32>
    %41 = vector.shape_cast %40 : vector<32x128xf32> to vector<4x8x128xf32>
    %c0_22 = arith.constant 0 : index
    %c0_23 = arith.constant 0 : index
    %c0_24 = arith.constant 0 : index
    %42 = vector.load %arg7[%c0_22, %c0_23, %c0_24] : memref<4x8x128xf32, #tpu.memory_space<vmem>>, vector<4x8x128xf32>
    tpu.vector_store %arg7[%c0_22, %c0_23, %c0_24], %41 {strides = array<i32>} : memref<4x8x128xf32, #tpu.memory_space<vmem>>, vector<4x8x128xf32>,
    return
  }
  func.func @transform_0(%arg0: i32, %arg1: i32) -> (i32, i32, i32) {
    %c0_i32 = arith.constant 0 : i32
    %c0_i32_0 = arith.constant 0 : i32
    return %arg0, %arg1, %c0_i32 : i32, i32, i32
  }
  func.func @transform_1(%arg0: i32, %arg1: i32) -> (i32, i32, i32) {
    %c0_i32 = arith.constant 0 : i32
    %c0_i32_0 = arith.constant 0 : i32
    %c0_i32_1 = arith.constant 0 : i32
    return %arg0, %c0_i32, %c0_i32_0 : i32, i32, i32
  }
  func.func @transform_2(%arg0: i32, %arg1: i32) -> (i32, i32) {
    %c0_i32 = arith.constant 0 : i32
    %c0_i32_0 = arith.constant 0 : i32
    %c0_i32_1 = arith.constant 0 : i32
    return %c0_i32, %c0_i32_0 : i32, i32
  }
  func.func @transform_3(%arg0: i32, %arg1: i32) -> (i32, i32) {
    %c0_i32 = arith.constant 0 : i32
    %c0_i32_0 = arith.constant 0 : i32
    %c0_i32_1 = arith.constant 0 : i32
    return %c0_i32, %c0_i32_0 : i32, i32
  }
  func.func @transform_4(%arg0: i32, %arg1: i32) -> (i32, i32) {
    %c0_i32 = arith.constant 0 : i32
    %c0_i32_0 = arith.constant 0 : i32
    %c0_i32_1 = arith.constant 0 : i32
    return %c0_i32, %c0_i32_0 : i32, i32
  }
  func.func @transform_5(%arg0: i32, %arg1: i32) -> (i32, i32, i32) {
    %c0_i32 = arith.constant 0 : i32
    %c0_i32_0 = arith.constant 0 : i32
    return %arg0, %arg1, %c0_i32 : i32, i32, i32
  }
  func.func @transform_6(%arg0: i32, %arg1: i32) -> (i32, i32, i32) {
    %c0_i32 = arith.constant 0 : i32
    %c0_i32_0 = arith.constant 0 : i32
    return %arg0, %arg1, %c0_i32 : i32, i32, i32
  }
}

</mosaic_0001>

<llo_original>
// kernel: cross_attention.1
$region0: #{cross_attention.1}
  #allocation0 [shape = 'u32[]', space=smem, size = 0x4, offset = 0x4, fixed_abs, tag = 'smem constant byte address 0x4 - core index']
  #allocation1 [shape = 'u32[72,128]{1,0:T(1,128)}', space=vmem, size = 0x9000, scoped, tag = 'internal scratch']
  %s0 = inlined_call_operand.vmem [shape: f32[8,8,128], index: 0, kind: input, shape index: {}]
  %s1 = inlined_call_operand.vmem [shape: f32[8,128,128], index: 1, kind: input, shape index: {}]
  %s2 = inlined_call_operand.vmem [shape: bf16[128,128], index: 2, kind: input, shape index: {}]
  %s3 = inlined_call_operand.vmem [shape: bf16[128,128], index: 3, kind: input, shape index: {}]
  %s4 = inlined_call_operand.vmem [shape: bf16[128,128], index: 4, kind: input, shape index: {}]
  %s5 = inlined_call_operand.hbm [shape: f32[8,8,128], index: 5, kind: output, shape index: {0}]
  %s6 = inlined_call_operand.hbm [shape: bf16[8,8,128], index: 6, kind: output, shape index: {1}]
  %7 = xla_tuple %s5, %s6
  %s8 = sld [smem:[#allocation0]]
  $region61: #{cross_attention.1} parent=0
    _
  %s10 = ssub.s32 1, %s8
  %s11 = scalar_select 0, %s10, %s8
  $region1: #{cross_attention.1} parent=0
    #allocation2 [shape = 'u8[32768]{0}', space=vmem, size = 0x8000, scoped, tag = 'output window, operand 0']
    #allocation3 [shape = 's32[2]{0}', space=sflag, size = 0x8, scoped, tag = 'scoped memory for cross_attention.1']
    #allocation4 [shape = 'u8[16384]{0}', space=vmem, size = 0x4000, scoped, tag = 'output window, operand 1']
    #allocation5 [shape = 's32[2]{0}', space=sflag, size = 0x8, scoped, tag = 'scoped memory for cross_attention.1']
    %12 = vsyncpa [#allocation3], 0
    %s13 = scalar_lea.sflag [#allocation3], 1
    %14 = vsyncpa %s13, 0
    %15 = vsyncpa [#allocation5], 0
    %s16 = scalar_lea.sflag [#allocation5], 1
    %17 = vsyncpa %s16, 0
    loop: start=0, step=1, limit=4
    $region2: #{cross_attention.1} parent=1 // loop_pre_header
      _
    $region3: #{cross_attention.1} parent=1 // loop_header
      %s19 = sphi 0, %s23
      %p20 = scmp.ge.s32.totalorder %s19, 4
      %s26 = sphi 0, %s38
      %s27 = sphi 0, %s34
      %s28 = sphi 0, %s26
      %s29 = sphi 0, %s27
      %s30 = sphi 0, %s28
      %s31 = sphi 0, %s29
      %s43 = sphi 0, %s45
      %s46 = sphi 0, %s43
      %s47 = sphi 0, %s46
      %s63 = sphi 0, %s47
      %s69 = sphi 0, %s71
      %s72 = sphi 0, %s69
      %s73 = sphi 0, %s72
      %s89 = sphi 0, %s73
      %s93 = sphi 0, %s93
      %s95 = sphi 0, %s93
      %s96 = sphi 0, %s95
      %s110 = sphi 0, %s96
      %s114 = sphi 0, %s114
      %s116 = sphi 0, %s114
      %s117 = sphi 0, %s116
      %s131 = sphi 0, %s117
      %s135 = sphi 0, %s135
      %s137 = sphi 0, %s135
      %s138 = sphi 0, %s137
      %s152 = sphi 0, %s138
      %s160 = sphi 0, %s162
      %s163 = sphi 0, %s160
      %s164 = sphi 0, %s163
      %s180 = sphi 0, %s164
      %s188 = sphi 0, %s190
      %s191 = sphi 0, %s188
      %s192 = sphi 0, %s191
      %s208 = sphi 0, %s192
    $region4: #{cross_attention.1} parent=1 // loop_header_branch
      %22 = sbr.rel (%p20) target = $region8
    $region5: #{cross_attention.1} parent=1 // loop_body
      %s24 = ssub.s32 %s19, 1
      %s25 = ssub.s32 %s19, 2
      %s32 = sadd.s32 1, %s27
      %p33 = scmp.ge.s32.totalorder %s32, 1
      %s34 = scalar_select %p33, 0, %s32
      %s35 = sadd.s32 1, %s26
      %s36 = scalar_select %p33, %s35, %s26
      %p37 = scmp.ge.s32.totalorder %s36, 2
      %s38 = scalar_select %p37, 0, %s36
      %s39 = ssub.s32 %s26, %s38
      %s40 = ssub.s32 %s27, %s34
      %s41 = sor.u32 %s39, %s40
      %p42 = scmp.eq.s32.totalorder %s41, 0
      %s44 = sadd.s32 %s43, 1
      %s45 = scalar_select %p42, %s43, %s44
      %p48 = pneg %p42
      %p49 = scmp.eq.s32.totalorder %s19, 1
      %p50 = por %p48, %p49
      %p51 = scmp.ne.s32.totalorder %s43, %s46
      %p52 = scmp.eq.s32.totalorder %s19, 0
      %p53 = por %p51, %p52
      %p54 = scmp.ne.s32.totalorder %s43, %s46
      %p55 = scmp.eq.s32.totalorder %s24, 1
      %p56 = por %p54, %p55
      %p57 = scmp.ne.s32.totalorder %s46, %s47
      %p58 = scmp.eq.s32.totalorder %s24, 0
      %p59 = por %p57, %p58
      %p60 = scmp.ne.s32.totalorder %s46, %s47
      %p61 = scmp.eq.s32.totalorder %s25, 1
      %p62 = por %p60, %p61
      %p64 = scmp.ne.s32.totalorder %s47, %s63
      %p65 = scmp.eq.s32.totalorder %s25, 0
      %p66 = por %p64, %p65
      %s67 = ssub.s32 %s26, %s38
      %p68 = scmp.eq.s32.totalorder %s67, 0
      %s70 = sadd.s32 %s69, 1
      %s71 = scalar_select %p68, %s69, %s70
      %p74 = pneg %p68
      %p75 = scmp.eq.s32.totalorder %s19, 1
      %p76 = por %p74, %p75
      %p77 = scmp.ne.s32.totalorder %s69, %s72
      %p78 = scmp.eq.s32.totalorder %s19, 0
      %p79 = por %p77, %p78
      %p80 = scmp.ne.s32.totalorder %s69, %s72
      %p81 = scmp.eq.s32.totalorder %s24, 1
      %p82 = por %p80, %p81
      %p83 = scmp.ne.s32.totalorder %s72, %s73
      %p84 = scmp.eq.s32.totalorder %s24, 0
      %p85 = por %p83, %p84
      %p86 = scmp.ne.s32.totalorder %s72, %s73
      %p87 = scmp.eq.s32.totalorder %s25, 1
      %p88 = por %p86, %p87
      %p90 = scmp.ne.s32.totalorder %s73, %s89
      %p91 = scmp.eq.s32.totalorder %s25, 0
      %p92 = por %p90, %p91
      %s94 = sadd.s32 %s93, 1
      %p97 = scmp.eq.s32.totalorder %s19, 1
      %p98 = scmp.ne.s32.totalorder %s93, %s95
      %p99 = scmp.eq.s32.totalorder %s19, 0
      %p100 = por %p98, %p99
      %p101 = scmp.ne.s32.totalorder %s93, %s95
      %p102 = scmp.eq.s32.totalorder %s24, 1
      %p103 = por %p101, %p102
      %p104 = scmp.ne.s32.totalorder %s95, %s96
      %p105 = scmp.eq.s32.totalorder %s24, 0
      %p106 = por %p104, %p105
      %p107 = scmp.ne.s32.totalorder %s95, %s96
      %p108 = scmp.eq.s32.totalorder %s25, 1
      %p109 = por %p107, %p108
      %p111 = scmp.ne.s32.totalorder %s96, %s110
      %p112 = scmp.eq.s32.totalorder %s25, 0
      %p113 = por %p111, %p112
      %s115 = sadd.s32 %s114, 1
      %p118 = scmp.eq.s32.totalorder %s19, 1
      %p119 = scmp.ne.s32.totalorder %s114, %s116
      %p120 = scmp.eq.s32.totalorder %s19, 0
      %p121 = por %p119, %p120
      %p122 = scmp.ne.s32.totalorder %s114, %s116
      %p123 = scmp.eq.s32.totalorder %s24, 1
      %p124 = por %p122, %p123
      %p125 = scmp.ne.s32.totalorder %s116, %s117
      %p126 = scmp.eq.s32.totalorder %s24, 0
      %p127 = por %p125, %p126
      %p128 = scmp.ne.s32.totalorder %s116, %s117
      %p129 = scmp.eq.s32.totalorder %s25, 1
      %p130 = por %p128, %p129
      %p132 = scmp.ne.s32.totalorder %s117, %s131
      %p133 = scmp.eq.s32.totalorder %s25, 0
      %p134 = por %p132, %p133
      %s136 = sadd.s32 %s135, 1
      %p139 = scmp.eq.s32.totalorder %s19, 1
      %p140 = scmp.ne.s32.totalorder %s135, %s137
      %p141 = scmp.eq.s32.totalorder %s19, 0
      %p142 = por %p140, %p141
      %p143 = scmp.ne.s32.totalorder %s135, %s137
      %p144 = scmp.eq.s32.totalorder %s24, 1
      %p145 = por %p143, %p144
      %p146 = scmp.ne.s32.totalorder %s137, %s138
      %p147 = scmp.eq.s32.totalorder %s24, 0
      %p148 = por %p146, %p147
      %p149 = scmp.ne.s32.totalorder %s137, %s138
      %p150 = scmp.eq.s32.totalorder %s25, 1
      %p151 = por %p149, %p150
      %p153 = scmp.ne.s32.totalorder %s138, %s152
      %p154 = scmp.eq.s32.totalorder %s25, 0
      %p155 = por %p153, %p154
      %s156 = ssub.s32 %s26, %s38
      %s157 = ssub.s32 %s27, %s34
      %s158 = sor.u32 %s156, %s157
      %p159 = scmp.eq.s32.totalorder %s158, 0
      %s161 = sadd.s32 %s160, 1
      %s162 = scalar_select %p159, %s160, %s161
      %p165 = pneg %p159
      %p166 = scmp.eq.s32.totalorder %s19, 1
      %p167 = por %p165, %p166
      %p168 = scmp.ne.s32.totalorder %s160, %s163
      %p169 = scmp.eq.s32.totalorder %s19, 0
      %p170 = por %p168, %p169
      %p171 = scmp.ne.s32.totalorder %s160, %s163
      %p172 = scmp.eq.s32.totalorder %s24, 1
      %p173 = por %p171, %p172
      %p174 = scmp.ne.s32.totalorder %s163, %s164
      %p175 = scmp.eq.s32.totalorder %s24, 0
      %p176 = por %p174, %p175
      %p177 = scmp.ne.s32.totalorder %s163, %s164
      %p178 = scmp.eq.s32.totalorder %s25, 1
      %p179 = por %p177, %p178
      %p181 = scmp.ne.s32.totalorder %s164, %s180
      %p182 = scmp.eq.s32.totalorder %s25, 0
      %p183 = por %p181, %p182
      %s184 = ssub.s32 %s26, %s38
      %s185 = ssub.s32 %s27, %s34
      %s186 = sor.u32 %s184, %s185
      %p187 = scmp.eq.s32.totalorder %s186, 0
      %s189 = sadd.s32 %s188, 1
      %s190 = scalar_select %p187, %s188, %s189
      %p193 = pneg %p187
      %p194 = scmp.eq.s32.totalorder %s19, 1
      %p195 = por %p193, %p194
      %p196 = scmp.ne.s32.totalorder %s188, %s191
      %p197 = scmp.eq.s32.totalorder %s19, 0
      %p198 = por %p196, %p197
      %p199 = scmp.ne.s32.totalorder %s188, %s191
      %p200 = scmp.eq.s32.totalorder %s24, 1
      %p201 = por %p199, %p200
      %p202 = scmp.ne.s32.totalorder %s191, %s192
      %p203 = scmp.eq.s32.totalorder %s24, 0
      %p204 = por %p202, %p203
      %p205 = scmp.ne.s32.totalorder %s191, %s192
      %p206 = scmp.eq.s32.totalorder %s25, 1
      %p207 = por %p205, %p206
      %p209 = scmp.ne.s32.totalorder %s192, %s208
      %p210 = scmp.eq.s32.totalorder %s25, 0
      %p211 = por %p209, %p210
      %p212 = scmp.le.s32.totalorder 1, %s19
      %p213 = scmp.lt.s32.totalorder %s19, 3
      %p214 = pnand %p212, %p213
      %p215 = pneg %p214
      // Predicated region
      $region9: #{cross_attention.1} parent=5 // pred_check
        _
      $region10: #{cross_attention.1} parent=5 // pred_check_branch
        %217 = sbr.rel (%p214) target = $region12
      $region11: #{cross_attention.1} parent=5 // pred_region
        %s218 = ssub.s32 %s19, 1
        // Predicated region
        $region13: #{cross_attention.1} parent=11 // pred_check
          %p219 = pneg %p106
        $region14: #{cross_attention.1} parent=11 // pred_check_branch
          %221 = sbr.rel (%p219) target = $region16
        $region15: #{cross_attention.1} parent=11 // pred_region
          _
        $region16: #{cross_attention.1} parent=11 // pred_fallthru
          _
        // Predicated region
        $region17: #{cross_attention.1} parent=11 // pred_check
          %p222 = pneg %p127
        $region18: #{cross_attention.1} parent=11 // pred_check_branch
          %224 = sbr.rel (%p222) target = $region20
        $region19: #{cross_attention.1} parent=11 // pred_region
          _
        $region20: #{cross_attention.1} parent=11 // pred_fallthru
          _
        // Predicated region
        $region21: #{cross_attention.1} parent=11 // pred_check
          %p225 = pneg %p148
        $region22: #{cross_attention.1} parent=11 // pred_check_branch
          %227 = sbr.rel (%p225) target = $region24
        $region23: #{cross_attention.1} parent=11 // pred_region
          _
        $region24: #{cross_attention.1} parent=11 // pred_fallthru
          _
      $region12: #{cross_attention.1} parent=5 // pred_fallthru
        _
      %p228 = scmp.lt.s32.totalorder %s19, 2
      // Predicated region
      $region25: #{cross_attention.1} parent=5 // pred_check
        %p229 = pneg %p228
      $region26: #{cross_attention.1} parent=5 // pred_check_branch
        %231 = sbr.rel (%p229) target = $region28
      $region27: #{cross_attention.1} parent=5 // pred_region
        // Predicated region
        $region29: #{cross_attention.1} parent=27 // pred_check
          %p232 = pneg %p53
        $region30: #{cross_attention.1} parent=27 // pred_check_branch
          %234 = sbr.rel (%p232) target = $region32
        $region31: #{cross_attention.1} parent=27 // pred_region
          %s235 = smul.u32 4, %s26
          %p236 = scmp.lt.s32.totalorder %s235, 7
          %s237 = scalar_select %p236, %s235, 7
          %p238 = scmp.lt.s32.totalorder %s27, 0
          %s239 = scalar_select %p238, %s27, 0
          %s240 = sadd.s32 %s239, %s237
          %s241 = smul.addr %s240, 8
          %s242 = scalar_lea.vmem %s0, %s241
          %s243 = smul.u32 4, %s26
        $region32: #{cross_attention.1} parent=27 // pred_fallthru
          _
        // Predicated region
        $region33: #{cross_attention.1} parent=27 // pred_check
          %p244 = pneg %p79
        $region34: #{cross_attention.1} parent=27 // pred_check_branch
          %246 = sbr.rel (%p244) target = $region36
        $region35: #{cross_attention.1} parent=27 // pred_region
          %s247 = smul.u32 4, %s26
          %p248 = scmp.lt.s32.totalorder %s247, 7
          %s249 = scalar_select %p248, %s247, 7
          %s250 = smul.addr %s249, 16
          %s251 = smul.addr %s250, 8
          %s252 = scalar_lea.vmem %s1, %s251
          %s253 = smul.u32 4, %s26
        $region36: #{cross_attention.1} parent=27 // pred_fallthru
          _
      $region28: #{cross_attention.1} parent=5 // pred_fallthru
        _
      %p254 = scmp.le.s32.totalorder 1, %s19
      %p255 = scmp.lt.s32.totalorder %s19, 3
      %p256 = pnand %p254, %p255
      %p257 = pneg %p256
      // Predicated region
      $region37: #{cross_attention.1} parent=5 // pred_check
        _
      $region38: #{cross_attention.1} parent=5 // pred_check_branch
        %259 = sbr.rel (%p256) target = $region40
      $region39: #{cross_attention.1} parent=5 // pred_region
        %s260 = ssub.s32 %s19, 1
        %s261 = smul.u32 4, %s28
        %p262 = scmp.lt.s32.totalorder %s261, 7
        %s263 = scalar_select %p262, %s261, 7
        %p264 = scmp.lt.s32.totalorder %s29, 0
        %s265 = scalar_select %p264, %s29, 0
        %s266 = sadd.s32 %s265, %s263
        %s267 = smul.addr %s266, 8
        %s268 = scalar_lea.vmem %s0, %s267
        %p269 = pneg %p59
        %p270 = pneg %p56
        %s271 = smul.u32 4, %s28
        %p272 = scmp.lt.s32.totalorder %s271, 7
        %s273 = scalar_select %p272, %s271, 7
        %s274 = smul.addr %s273, 16
        %s275 = smul.addr %s274, 8
        %s276 = scalar_lea.vmem %s1, %s275
        %p277 = pneg %p85
        %p278 = pneg %p82
        %p279 = pneg %p106
        %p280 = pneg %p103
        %p281 = pneg %p127
        %p282 = pneg %p124
        %p283 = pneg %p148
        %p284 = pneg %p145
        %p285 = pneg %p176
        %p286 = pneg %p173
        %s287 = sand.u32 %s163, 1
        %s288 = scalar_lea.sflag [#allocation3], %s287
        %s289 = sand.u32 %s163, 1
        %s290 = smul.addr %s289, 32
        %s291 = scalar_lea.vmem [#allocation2], %s290
        %p292 = pneg %p204
        %p293 = pneg %p201
        %s294 = sand.u32 %s191, 1
        %s295 = scalar_lea.sflag [#allocation5], %s294
        %s296 = sand.u32 %s191, 1
        %s297 = smul.addr %s296, 16
        %s298 = scalar_lea.vmem [#allocation4], %s297
        %s299 = smul.u32 4, %s28
        %p300 = scmp.lt.s32.totalorder %s299, 7
        %s301 = scalar_select %p300, %s299, 7
        %p302 = scmp.lt.s32.totalorder %s29, 0
        %s303 = scalar_select %p302, %s29, 0
        %s304 = sadd.s32 %s303, %s301
        %s305 = smul.addr %s304, 8
        %s306 = scalar_lea.vmem %s0, %s305
        %s307 = smul.u32 4, %s28
        %s308 = smul.u32 4, %s28
        %p309 = scmp.lt.s32.totalorder %s308, 7
        %s310 = scalar_select %p309, %s308, 7
        %s311 = smul.addr %s310, 16
        %s312 = smul.addr %s311, 8
        %s313 = scalar_lea.vmem %s1, %s312
        %s314 = smul.u32 4, %s28
        %s315 = smul.u32 4, %s28
        %s316 = smul.u32 4, %s28
        %v317 = vld [vmem:[%s313] sm:$0xff]
        %v318 = vld [vmem:[%s313 + $0x8] sm:$0xff]
        %v319 = vld [vmem:[%s313 + $0x10] sm:$0xff]
        %v320 = vld [vmem:[%s313 + $0x18] sm:$0xff]
        %v321 = vld [vmem:[%s313 + $0x20] sm:$0xff]
        %v322 = vld [vmem:[%s313 + $0x28] sm:$0xff]
        %v323 = vld [vmem:[%s313 + $0x30] sm:$0xff]
        %v324 = vld [vmem:[%s313 + $0x38] sm:$0xff]
        %v325 = vld [vmem:[%s313 + $0x40] sm:$0xff]
        %v326 = vld [vmem:[%s313 + $0x48] sm:$0xff]
        %v327 = vld [vmem:[%s313 + $0x50] sm:$0xff]
        %v328 = vld [vmem:[%s313 + $0x58] sm:$0xff]
        %v329 = vld [vmem:[%s313 + $0x60] sm:$0xff]
        %v330 = vld [vmem:[%s313 + $0x68] sm:$0xff]
        %v331 = vld [vmem:[%s313 + $0x70] sm:$0xff]
        %v332 = vld [vmem:[%s313 + $0x78] sm:$0xff]
        %v333 = vld [vmem:[%s313 + $0x80] sm:$0xff]
        %v334 = vld [vmem:[%s313 + $0x88] sm:$0xff]
        %v335 = vld [vmem:[%s313 + $0x90] sm:$0xff]
        %v336 = vld [vmem:[%s313 + $0x98] sm:$0xff]
        %v337 = vld [vmem:[%s313 + $0xa0] sm:$0xff]
        %v338 = vld [vmem:[%s313 + $0xa8] sm:$0xff]
        %v339 = vld [vmem:[%s313 + $0xb0] sm:$0xff]
        %v340 = vld [vmem:[%s313 + $0xb8] sm:$0xff]
        %v341 = vld [vmem:[%s313 + $0xc0] sm:$0xff]
        %v342 = vld [vmem:[%s313 + $0xc8] sm:$0xff]
        %v343 = vld [vmem:[%s313 + $0xd0] sm:$0xff]
        %v344 = vld [vmem:[%s313 + $0xd8] sm:$0xff]
        %v345 = vld [vmem:[%s313 + $0xe0] sm:$0xff]
        %v346 = vld [vmem:[%s313 + $0xe8] sm:$0xff]
        %v347 = vld [vmem:[%s313 + $0xf0] sm:$0xff]
        %v348 = vld [vmem:[%s313 + $0xf8] sm:$0xff]
        %v349 = vld [vmem:[%s313 + $0x100] sm:$0xff]
        %v350 = vld [vmem:[%s313 + $0x108] sm:$0xff]
        %v351 = vld [vmem:[%s313 + $0x110] sm:$0xff]
        %v352 = vld [vmem:[%s313 + $0x118] sm:$0xff]
        %v353 = vld [vmem:[%s313 + $0x120] sm:$0xff]
        %v354 = vld [vmem:[%s313 + $0x128] sm:$0xff]
        %v355 = vld [vmem:[%s313 + $0x130] sm:$0xff]
        %v356 = vld [vmem:[%s313 + $0x138] sm:$0xff]
        %v357 = vld [vmem:[%s313 + $0x140] sm:$0xff]
        %v358 = vld [vmem:[%s313 + $0x148] sm:$0xff]
        %v359 = vld [vmem:[%s313 + $0x150] sm:$0xff]
        %v360 = vld [vmem:[%s313 + $0x158] sm:$0xff]
        %v361 = vld [vmem:[%s313 + $0x160] sm:$0xff]
        %v362 = vld [vmem:[%s313 + $0x168] sm:$0xff]
        %v363 = vld [vmem:[%s313 + $0x170] sm:$0xff]
        %v364 = vld [vmem:[%s313 + $0x178] sm:$0xff]
        %v365 = vld [vmem:[%s313 + $0x180] sm:$0xff]
        %v366 = vld [vmem:[%s313 + $0x188] sm:$0xff]
        %v367 = vld [vmem:[%s313 + $0x190] sm:$0xff]
        %v368 = vld [vmem:[%s313 + $0x198] sm:$0xff]
        %v369 = vld [vmem:[%s313 + $0x1a0] sm:$0xff]
        %v370 = vld [vmem:[%s313 + $0x1a8] sm:$0xff]
        %v371 = vld [vmem:[%s313 + $0x1b0] sm:$0xff]
        %v372 = vld [vmem:[%s313 + $0x1b8] sm:$0xff]
        %v373 = vld [vmem:[%s313 + $0x1c0] sm:$0xff]
        %v374 = vld [vmem:[%s313 + $0x1c8] sm:$0xff]
        %v375 = vld [vmem:[%s313 + $0x1d0] sm:$0xff]
        %v376 = vld [vmem:[%s313 + $0x1d8] sm:$0xff]
        %v377 = vld [vmem:[%s313 + $0x1e0] sm:$0xff]
        %v378 = vld [vmem:[%s313 + $0x1e8] sm:$0xff]
        %v379 = vld [vmem:[%s313 + $0x1f0] sm:$0xff]
        %v380 = vld [vmem:[%s313 + $0x1f8] sm:$0xff]
        %v381 = vpack.c.bf16 %v317, %v317
        %v382 = vpack.c.bf16 %v318, %v318
        %v383 = vpack.c.bf16 %v319, %v319
        %v384 = vpack.c.bf16 %v320, %v320
        %v385 = vpack.c.bf16 %v321, %v321
        %v386 = vpack.c.bf16 %v322, %v322
        %v387 = vpack.c.bf16 %v323, %v323
        %v388 = vpack.c.bf16 %v324, %v324
        %v389 = vpack.c.bf16 %v325, %v325
        %v390 = vpack.c.bf16 %v326, %v326
        %v391 = vpack.c.bf16 %v327, %v327
        %v392 = vpack.c.bf16 %v328, %v328
        %v393 = vpack.c.bf16 %v329, %v329
        %v394 = vpack.c.bf16 %v330, %v330
        %v395 = vpack.c.bf16 %v331, %v331
        %v396 = vpack.c.bf16 %v332, %v332
        %v397 = vpack.c.bf16 %v333, %v333
        %v398 = vpack.c.bf16 %v334, %v334
        %v399 = vpack.c.bf16 %v335, %v335
        %v400 = vpack.c.bf16 %v336, %v336
        %v401 = vpack.c.bf16 %v337, %v337
        %v402 = vpack.c.bf16 %v338, %v338
        %v403 = vpack.c.bf16 %v339, %v339
        %v404 = vpack.c.bf16 %v340, %v340
        %v405 = vpack.c.bf16 %v341, %v341
        %v406 = vpack.c.bf16 %v342, %v342
        %v407 = vpack.c.bf16 %v343, %v343
        %v408 = vpack.c.bf16 %v344, %v344
        %v409 = vpack.c.bf16 %v345, %v345
        %v410 = vpack.c.bf16 %v346, %v346
        %v411 = vpack.c.bf16 %v347, %v347
        %v412 = vpack.c.bf16 %v348, %v348
        %v413 = vpack.c.bf16 %v349, %v349
        %v414 = vpack.c.bf16 %v350, %v350
        %v415 = vpack.c.bf16 %v351, %v351
        %v416 = vpack.c.bf16 %v352, %v352
        %v417 = vpack.c.bf16 %v353, %v353
        %v418 = vpack.c.bf16 %v354, %v354
        %v419 = vpack.c.bf16 %v355, %v355
        %v420 = vpack.c.bf16 %v356, %v356
        %v421 = vpack.c.bf16 %v357, %v357
        %v422 = vpack.c.bf16 %v358, %v358
        %v423 = vpack.c.bf16 %v359, %v359
        %v424 = vpack.c.bf16 %v360, %v360
        %v425 = vpack.c.bf16 %v361, %v361
        %v426 = vpack.c.bf16 %v362, %v362
        %v427 = vpack.c.bf16 %v363, %v363
        %v428 = vpack.c.bf16 %v364, %v364
        %v429 = vpack.c.bf16 %v365, %v365
        %v430 = vpack.c.bf16 %v366, %v366
        %v431 = vpack.c.bf16 %v367, %v367
        %v432 = vpack.c.bf16 %v368, %v368
        %v433 = vpack.c.bf16 %v369, %v369
        %v434 = vpack.c.bf16 %v370, %v370
        %v435 = vpack.c.bf16 %v371, %v371
        %v436 = vpack.c.bf16 %v372, %v372
        %v437 = vpack.c.bf16 %v373, %v373
        %v438 = vpack.c.bf16 %v374, %v374
        %v439 = vpack.c.bf16 %v375, %v375
        %v440 = vpack.c.bf16 %v376, %v376
        %v441 = vpack.c.bf16 %v377, %v377
        %v442 = vpack.c.bf16 %v378, %v378
        %v443 = vpack.c.bf16 %v379, %v379
        %v444 = vpack.c.bf16 %v380, %v380
        %v445 = vld [vmem:[%s306] sm:$0xff]
        %v446 = vld [vmem:[%s306 + $0x8] sm:$0xff]
        %v447 = vld [vmem:[%s306 + $0x10] sm:$0xff]
        %v448 = vld [vmem:[%s306 + $0x18] sm:$0xff]
        %v449 = vpack.c.bf16 %v446, %v445
        %v450 = vpack.c.bf16 %v448, %v447
        %v451 = vld [vmem:[%s2] sm:$0xf]
        %v452 = vld [vmem:[%s2 + $0x4] sm:$0xf]
        %v453 = vld [vmem:[%s2 + $0x8] sm:$0xf]
        %v454 = vld [vmem:[%s2 + $0xc] sm:$0xf]
        %v455 = vld [vmem:[%s2 + $0x10] sm:$0xf]
        %v456 = vld [vmem:[%s2 + $0x14] sm:$0xf]
        %v457 = vld [vmem:[%s2 + $0x18] sm:$0xf]
        %v458 = vld [vmem:[%s2 + $0x1c] sm:$0xf]
        %v459 = vld [vmem:[%s2 + $0x20] sm:$0xf]
        %v460 = vld [vmem:[%s2 + $0x24] sm:$0xf]
        %v461 = vld [vmem:[%s2 + $0x28] sm:$0xf]
        %v462 = vld [vmem:[%s2 + $0x2c] sm:$0xf]
        %v463 = vld [vmem:[%s2 + $0x30] sm:$0xf]
        %v464 = vld [vmem:[%s2 + $0x34] sm:$0xf]
        %v465 = vld [vmem:[%s2 + $0x38] sm:$0xf]
        %v466 = vld [vmem:[%s2 + $0x3c] sm:$0xf]
        %v483 = vunpack.c.l.b16 %v451
        %v484 = vunpack.c.l.b16 %v452
        %v485 = vunpack.c.l.b16 %v453
        %v486 = vunpack.c.l.b16 %v454
        %v487 = vunpack.c.l.b16 %v455
        %v488 = vunpack.c.l.b16 %v456
        %v489 = vunpack.c.l.b16 %v457
        %v490 = vunpack.c.l.b16 %v458
        %v491 = vunpack.c.l.b16 %v459
        %v492 = vunpack.c.l.b16 %v460
        %v493 = vunpack.c.l.b16 %v461
        %v494 = vunpack.c.l.b16 %v462
        %v495 = vunpack.c.l.b16 %v463
        %v496 = vunpack.c.l.b16 %v464
        %v497 = vunpack.c.l.b16 %v465
        %v498 = vunpack.c.l.b16 %v466
        %v499 = vpack.c.b16 %v484, %v483
        %v500 = vpack.c.b16 %v486, %v485
        %v501 = vpack.c.b16 %v488, %v487
        %v502 = vpack.c.b16 %v490, %v489
        %v503 = vpack.c.b16 %v492, %v491
        %v504 = vpack.c.b16 %v494, %v493
        %v505 = vpack.c.b16 %v496, %v495
        %v506 = vpack.c.b16 %v498, %v497
        %515 = vmatpush.bf16.msra.mxu0 %v506
        %516 = vmatpush.bf16.msra.mxu0 %v505
        %517 = vmatpush.bf16.msra.mxu0 %v504
        %518 = vmatpush.bf16.msra.mxu0 %v503
        %519 = vmatpush.bf16.msra.mxu0 %v502
        %520 = vmatpush.bf16.msra.mxu0 %v501
        %521 = vmatpush.bf16.msra.mxu0 %v500
        %522 = vmatpush.bf16.msra.mxu0 %v499
        %523 = vmatmul.bf16.gmra.mxu0 %v449
        %v524 = vpop.f32.mrf.mxu0
        %v525 = vadd.f32 0.0, %v524
        %v526 = vpop.f32.mrf.mxu0
        %v527 = vadd.f32 0.0, %v526
        %528 = vmatmul.bf16.gmra.mxu0 %v450
        %v529 = vpop.f32.mrf.mxu0
        %v530 = vadd.f32 0.0, %v529
        %v531 = vpop.f32.mrf.mxu0
        %v532 = vadd.f32 0.0, %v531
        %533 = vdwg.mxu0
        %v534 = vpack.c.bf16 %v525, %v525
        %v535 = vpack.c.bf16 %v527, %v527
        %v536 = vpack.c.bf16 %v530, %v530
        %v537 = vpack.c.bf16 %v532, %v532
        %v554 = vunpack.c.l.b16 %v381
        %v555 = vunpack.c.l.b16 %v382
        %v556 = vunpack.c.l.b16 %v383
        %v557 = vunpack.c.l.b16 %v384
        %v558 = vunpack.c.l.b16 %v385
        %v559 = vunpack.c.l.b16 %v386
        %v560 = vunpack.c.l.b16 %v387
        %v561 = vunpack.c.l.b16 %v388
        %v562 = vunpack.c.l.b16 %v389
        %v563 = vunpack.c.l.b16 %v390
        %v564 = vunpack.c.l.b16 %v391
        %v565 = vunpack.c.l.b16 %v392
        %v566 = vunpack.c.l.b16 %v393
        %v567 = vunpack.c.l.b16 %v394
        %v568 = vunpack.c.l.b16 %v395
        %v569 = vunpack.c.l.b16 %v396
        %v570 = vpack.c.b16 %v555, %v554
        %v571 = vpack.c.b16 %v557, %v556
        %v572 = vpack.c.b16 %v559, %v558
        %v573 = vpack.c.b16 %v561, %v560
        %v574 = vpack.c.b16 %v563, %v562
        %v575 = vpack.c.b16 %v565, %v564
        %v576 = vpack.c.b16 %v567, %v566
        %v577 = vpack.c.b16 %v569, %v568
        %586 = vmatpush.bf16.xpose.msra.mxu0 %v577
        %587 = vmatpush.bf16.xpose.msra.mxu0 %v576
        %588 = vmatpush.bf16.xpose.msra.mxu0 %v575
        %589 = vmatpush.bf16.xpose.msra.mxu0 %v574
        %590 = vmatpush.bf16.xpose.msra.mxu0 %v573
        %591 = vmatpush.bf16.xpose.msra.mxu0 %v572
        %592 = vmatpush.bf16.xpose.msra.mxu0 %v571
        %593 = vmatpush.bf16.xpose.msra.mxu0 %v570
        %594 = vmatmul.bf16.gmra.mxu0 %v534
        %v595 = vpop.f32.mrf.mxu0
        %v596 = vadd.f32 0.0, %v595
        %v597 = vpop.f32.mrf.mxu0
        %598 = vdwg.mxu0
        %v615 = vunpack.c.l.b16 %v397
        %v616 = vunpack.c.l.b16 %v398
        %v617 = vunpack.c.l.b16 %v399
        %v618 = vunpack.c.l.b16 %v400
        %v619 = vunpack.c.l.b16 %v401
        %v620 = vunpack.c.l.b16 %v402
        %v621 = vunpack.c.l.b16 %v403
        %v622 = vunpack.c.l.b16 %v404
        %v623 = vunpack.c.l.b16 %v405
        %v624 = vunpack.c.l.b16 %v406
        %v625 = vunpack.c.l.b16 %v407
        %v626 = vunpack.c.l.b16 %v408
        %v627 = vunpack.c.l.b16 %v409
        %v628 = vunpack.c.l.b16 %v410
        %v629 = vunpack.c.l.b16 %v411
        %v630 = vunpack.c.l.b16 %v412
        %v631 = vpack.c.b16 %v616, %v615
        %v632 = vpack.c.b16 %v618, %v617
        %v633 = vpack.c.b16 %v620, %v619
        %v634 = vpack.c.b16 %v622, %v621
        %v635 = vpack.c.b16 %v624, %v623
        %v636 = vpack.c.b16 %v626, %v625
        %v637 = vpack.c.b16 %v628, %v627
        %v638 = vpack.c.b16 %v630, %v629
        %647 = vmatpush.bf16.xpose.msra.mxu0 %v638
        %648 = vmatpush.bf16.xpose.msra.mxu0 %v637
        %649 = vmatpush.bf16.xpose.msra.mxu0 %v636
        %650 = vmatpush.bf16.xpose.msra.mxu0 %v635
        %651 = vmatpush.bf16.xpose.msra.mxu0 %v634
        %652 = vmatpush.bf16.xpose.msra.mxu0 %v633
        %653 = vmatpush.bf16.xpose.msra.mxu0 %v632
        %654 = vmatpush.bf16.xpose.msra.mxu0 %v631
        %655 = vmatmul.bf16.gmra.mxu0 %v535
        %v656 = vpop.f32.mrf.mxu0
        %v657 = vadd.f32 0.0, %v656
        %v658 = vpop.f32.mrf.mxu0
        %659 = vdwg.mxu0
        %v676 = vunpack.c.l.b16 %v413
        %v677 = vunpack.c.l.b16 %v414
        %v678 = vunpack.c.l.b16 %v415
        %v679 = vunpack.c.l.b16 %v416
        %v680 = vunpack.c.l.b16 %v417
        %v681 = vunpack.c.l.b16 %v418
        %v682 = vunpack.c.l.b16 %v419
        %v683 = vunpack.c.l.b16 %v420
        %v684 = vunpack.c.l.b16 %v421
        %v685 = vunpack.c.l.b16 %v422
        %v686 = vunpack.c.l.b16 %v423
        %v687 = vunpack.c.l.b16 %v424
        %v688 = vunpack.c.l.b16 %v425
        %v689 = vunpack.c.l.b16 %v426
        %v690 = vunpack.c.l.b16 %v427
        %v691 = vunpack.c.l.b16 %v428
        %v692 = vpack.c.b16 %v677, %v676
        %v693 = vpack.c.b16 %v679, %v678
        %v694 = vpack.c.b16 %v681, %v680
        %v695 = vpack.c.b16 %v683, %v682
        %v696 = vpack.c.b16 %v685, %v684
        %v697 = vpack.c.b16 %v687, %v686
        %v698 = vpack.c.b16 %v689, %v688
        %v699 = vpack.c.b16 %v691, %v690
        %708 = vmatpush.bf16.xpose.msra.mxu0 %v699
        %709 = vmatpush.bf16.xpose.msra.mxu0 %v698
        %710 = vmatpush.bf16.xpose.msra.mxu0 %v697
        %711 = vmatpush.bf16.xpose.msra.mxu0 %v696
        %712 = vmatpush.bf16.xpose.msra.mxu0 %v695
        %713 = vmatpush.bf16.xpose.msra.mxu0 %v694
        %714 = vmatpush.bf16.xpose.msra.mxu0 %v693
        %715 = vmatpush.bf16.xpose.msra.mxu0 %v692
        %716 = vmatmul.bf16.gmra.mxu0 %v536
        %v717 = vpop.f32.mrf.mxu0
        %v718 = vadd.f32 0.0, %v717
        %v719 = vpop.f32.mrf.mxu0
        %720 = vdwg.mxu0
        %v737 = vunpack.c.l.b16 %v429
        %v738 = vunpack.c.l.b16 %v430
        %v739 = vunpack.c.l.b16 %v431
        %v740 = vunpack.c.l.b16 %v432
        %v741 = vunpack.c.l.b16 %v433
        %v742 = vunpack.c.l.b16 %v434
        %v743 = vunpack.c.l.b16 %v435
        %v744 = vunpack.c.l.b16 %v436
        %v745 = vunpack.c.l.b16 %v437
        %v746 = vunpack.c.l.b16 %v438
        %v747 = vunpack.c.l.b16 %v439
        %v748 = vunpack.c.l.b16 %v440
        %v749 = vunpack.c.l.b16 %v441
        %v750 = vunpack.c.l.b16 %v442
        %v751 = vunpack.c.l.b16 %v443
        %v752 = vunpack.c.l.b16 %v444
        %v753 = vpack.c.b16 %v738, %v737
        %v754 = vpack.c.b16 %v740, %v739
        %v755 = vpack.c.b16 %v742, %v741
        %v756 = vpack.c.b16 %v744, %v743
        %v757 = vpack.c.b16 %v746, %v745
        %v758 = vpack.c.b16 %v748, %v747
        %v759 = vpack.c.b16 %v750, %v749
        %v760 = vpack.c.b16 %v752, %v751
        %769 = vmatpush.bf16.xpose.msra.mxu0 %v760
        %770 = vmatpush.bf16.xpose.msra.mxu0 %v759
        %771 = vmatpush.bf16.xpose.msra.mxu0 %v758
        %772 = vmatpush.bf16.xpose.msra.mxu0 %v757
        %773 = vmatpush.bf16.xpose.msra.mxu0 %v756
        %774 = vmatpush.bf16.xpose.msra.mxu0 %v755
        %775 = vmatpush.bf16.xpose.msra.mxu0 %v754
        %776 = vmatpush.bf16.xpose.msra.mxu0 %v753
        %777 = vmatmul.bf16.gmra.mxu0 %v537
        %v778 = vpop.f32.mrf.mxu0
        %v779 = vadd.f32 0.0, %v778
        %v780 = vpop.f32.mrf.mxu0
        %781 = vdwg.mxu0
        %v782 = vlaneseq
        %v783 = vand.u32 %v782, 127
        %vm784 = vcmp.lt.s32.totalorder %v783, 8
        %v785 = vsel %vm784, %v596, -2.3819763e+38
        %v786 = vsel %vm784, %v657, -2.3819763e+38
        %v787 = vsel %vm784, %v718, -2.3819763e+38
        %v788 = vsel %vm784, %v779, -2.3819763e+38
        %789 = vmax.xlane.f32.xlu0 %v785
        %v790 = vpop.xlane.xlu0 %789
        %791 = vmax.xlane.f32.xlu0 %v786
        %v792 = vpop.xlane.xlu0 %791
        %793 = vmax.xlane.f32.xlu0 %v787
        %v794 = vpop.xlane.xlu0 %793
        %795 = vmax.xlane.f32.xlu0 %v788
        %v796 = vpop.xlane.xlu0 %795
        %v797 = vsub.f32 %v785, %v790
        %v798 = vsub.f32 %v786, %v792
        %v799 = vsub.f32 %v787, %v794
        %v800 = vsub.f32 %v788, %v796
        %v801 = vmul.f32 %v797, 1.442695
        %v802 = vpow.pop %v801
        %v803 = vmul.f32 %v798, 1.442695
        %v804 = vpow.pop %v803
        %v805 = vmul.f32 %v799, 1.442695
        %v806 = vpow.pop %v805
        %v807 = vmul.f32 %v800, 1.442695
        %v808 = vpow.pop %v807
        %809 = vadd.xlane.f32.xlu0 %v802
        %v810 = vpop.xlane.xlu0 %809
        %811 = vadd.xlane.f32.xlu0 %v804
        %v812 = vpop.xlane.xlu0 %811
        %813 = vadd.xlane.f32.xlu0 %v806
        %v814 = vpop.xlane.xlu0 %813
        %815 = vadd.xlane.f32.xlu0 %v808
        %v816 = vpop.xlane.xlu0 %815
        %v817 = vrcp.pop %v810
        %v818 = vrcp.pop %v812
        %v819 = vrcp.pop %v814
        %v820 = vrcp.pop %v816
        %v821 = vmul.f32 %v810, %v817
        %v822 = vmul.f32 %v812, %v818
        %v823 = vmul.f32 %v814, %v819
        %v824 = vmul.f32 %v816, %v820
        %v825 = vsub.f32 2.0, %v821
        %v826 = vsub.f32 2.0, %v822
        %v827 = vsub.f32 2.0, %v823
        %v828 = vsub.f32 2.0, %v824
        %v829 = vmul.f32 %v817, %v825
        %v830 = vmul.f32 %v818, %v826
        %v831 = vmul.f32 %v819, %v827
        %v832 = vmul.f32 %v820, %v828
        %v833 = vmul.f32 %v802, %v829
        %v834 = vmul.f32 %v804, %v830
        %v835 = vmul.f32 %v806, %v831
        %v836 = vmul.f32 %v808, %v832
        %v837 = vpack.c.bf16 %v833, %v833
        %v838 = vpack.c.bf16 %v834, %v834
        %v839 = vpack.c.bf16 %v835, %v835
        %v840 = vpack.c.bf16 %v836, %v836
        %841 = vst [vmem:[%s298] sm:$0xf] %v837
        %842 = vst [vmem:[%s298 + $0x4] sm:$0xf] %v838
        %843 = vst [vmem:[%s298 + $0x8] sm:$0xf] %v839
        %844 = vst [vmem:[%s298 + $0xc] sm:$0xf] %v840
        %845 = vmatpush.bf16.msra.mxu0 %v577
        %846 = vmatpush.bf16.msra.mxu0 %v576
        %847 = vmatpush.bf16.msra.mxu0 %v575
        %848 = vmatpush.bf16.msra.mxu0 %v574
        %849 = vmatpush.bf16.msra.mxu0 %v573
        %850 = vmatpush.bf16.msra.mxu0 %v572
        %851 = vmatpush.bf16.msra.mxu0 %v571
        %852 = vmatpush.bf16.msra.mxu0 %v570
        %853 = vmatmul.bf16.gmra.mxu0 %v837
        %v854 = vpop.f32.mrf.mxu0
        %v855 = vadd.f32 0.0, %v854
        %v856 = vpop.f32.mrf.mxu0
        %857 = vdwg.mxu0
        %858 = vmatpush.bf16.msra.mxu0 %v638
        %859 = vmatpush.bf16.msra.mxu0 %v637
        %860 = vmatpush.bf16.msra.mxu0 %v636
        %861 = vmatpush.bf16.msra.mxu0 %v635
        %862 = vmatpush.bf16.msra.mxu0 %v634
        %863 = vmatpush.bf16.msra.mxu0 %v633
        %864 = vmatpush.bf16.msra.mxu0 %v632
        %865 = vmatpush.bf16.msra.mxu0 %v631
        %866 = vmatmul.bf16.gmra.mxu0 %v838
        %v867 = vpop.f32.mrf.mxu0
        %v868 = vadd.f32 0.0, %v867
        %v869 = vpop.f32.mrf.mxu0
        %870 = vdwg.mxu0
        %871 = vmatpush.bf16.msra.mxu0 %v699
        %872 = vmatpush.bf16.msra.mxu0 %v698
        %873 = vmatpush.bf16.msra.mxu0 %v697
        %874 = vmatpush.bf16.msra.mxu0 %v696
        %875 = vmatpush.bf16.msra.mxu0 %v695
        %876 = vmatpush.bf16.msra.mxu0 %v694
        %877 = vmatpush.bf16.msra.mxu0 %v693
        %878 = vmatpush.bf16.msra.mxu0 %v692
        %879 = vmatmul.bf16.gmra.mxu0 %v839
        %v880 = vpop.f32.mrf.mxu0
        %v881 = vadd.f32 0.0, %v880
        %v882 = vpop.f32.mrf.mxu0
        %883 = vdwg.mxu0
        %884 = vmatpush.bf16.msra.mxu0 %v760
        %885 = vmatpush.bf16.msra.mxu0 %v759
        %886 = vmatpush.bf16.msra.mxu0 %v758
        %887 = vmatpush.bf16.msra.mxu0 %v757
        %888 = vmatpush.bf16.msra.mxu0 %v756
        %889 = vmatpush.bf16.msra.mxu0 %v755
        %890 = vmatpush.bf16.msra.mxu0 %v754
        %891 = vmatpush.bf16.msra.mxu0 %v753
        %892 = vmatmul.bf16.gmra.mxu0 %v840
        %v893 = vpop.f32.mrf.mxu0
        %v894 = vadd.f32 0.0, %v893
        %v895 = vpop.f32.mrf.mxu0
        %896 = vdwg.mxu0
        %v897 = vpack.c.bf16 %v868, %v855
        %v898 = vpack.c.bf16 %v894, %v881
        %v899 = vld [vmem:[%s3] sm:$0xf]
        %v900 = vld [vmem:[%s3 + $0x4] sm:$0xf]
        %v901 = vld [vmem:[%s3 + $0x8] sm:$0xf]
        %v902 = vld [vmem:[%s3 + $0xc] sm:$0xf]
        %v903 = vld [vmem:[%s3 + $0x10] sm:$0xf]
        %v904 = vld [vmem:[%s3 + $0x14] sm:$0xf]
        %v905 = vld [vmem:[%s3 + $0x18] sm:$0xf]
        %v906 = vld [vmem:[%s3 + $0x1c] sm:$0xf]
        %v907 = vld [vmem:[%s3 + $0x20] sm:$0xf]
        %v908 = vld [vmem:[%s3 + $0x24] sm:$0xf]
        %v909 = vld [vmem:[%s3 + $0x28] sm:$0xf]
        %v910 = vld [vmem:[%s3 + $0x2c] sm:$0xf]
        %v911 = vld [vmem:[%s3 + $0x30] sm:$0xf]
        %v912 = vld [vmem:[%s3 + $0x34] sm:$0xf]
        %v913 = vld [vmem:[%s3 + $0x38] sm:$0xf]
        %v914 = vld [vmem:[%s3 + $0x3c] sm:$0xf]
        %v915 = vld [vmem:[%s4] sm:$0xf]
        %v916 = vld [vmem:[%s4 + $0x4] sm:$0xf]
        %v917 = vld [vmem:[%s4 + $0x8] sm:$0xf]
        %v918 = vld [vmem:[%s4 + $0xc] sm:$0xf]
        %v919 = vld [vmem:[%s4 + $0x10] sm:$0xf]
        %v920 = vld [vmem:[%s4 + $0x14] sm:$0xf]
        %v921 = vld [vmem:[%s4 + $0x18] sm:$0xf]
        %v922 = vld [vmem:[%s4 + $0x1c] sm:$0xf]
        %v923 = vld [vmem:[%s4 + $0x20] sm:$0xf]
        %v924 = vld [vmem:[%s4 + $0x24] sm:$0xf]
        %v925 = vld [vmem:[%s4 + $0x28] sm:$0xf]
        %v926 = vld [vmem:[%s4 + $0x2c] sm:$0xf]
        %v927 = vld [vmem:[%s4 + $0x30] sm:$0xf]
        %v928 = vld [vmem:[%s4 + $0x34] sm:$0xf]
        %v929 = vld [vmem:[%s4 + $0x38] sm:$0xf]
        %v930 = vld [vmem:[%s4 + $0x3c] sm:$0xf]
        %v935 = vunpack.c.l.b16 %v534
        %v936 = vunpack.c.l.b16 %v535
        %v937 = vunpack.c.l.b16 %v536
        %v938 = vunpack.c.l.b16 %v537
        %v939 = vpack.c.b16 %v936, %v935
        %v940 = vpack.c.b16 %v938, %v937
        %v959 = vunpack.c.l.b16 %v915
        %v960 = vunpack.c.l.b16 %v916
        %v961 = vunpack.c.l.b16 %v917
        %v962 = vunpack.c.l.b16 %v918
        %v963 = vunpack.c.l.b16 %v919
        %v964 = vunpack.c.l.b16 %v920
        %v965 = vunpack.c.l.b16 %v921
        %v966 = vunpack.c.l.b16 %v922
        %v967 = vunpack.c.l.b16 %v923
        %v968 = vunpack.c.l.b16 %v924
        %v969 = vunpack.c.l.b16 %v925
        %v970 = vunpack.c.l.b16 %v926
        %v971 = vunpack.c.l.b16 %v927
        %v972 = vunpack.c.l.b16 %v928
        %v973 = vunpack.c.l.b16 %v929
        %v974 = vunpack.c.l.b16 %v930
        %v975 = vpack.c.b16 %v960, %v959
        %v976 = vpack.c.b16 %v962, %v961
        %v977 = vpack.c.b16 %v964, %v963
        %v978 = vpack.c.b16 %v966, %v965
        %v979 = vpack.c.b16 %v968, %v967
        %v980 = vpack.c.b16 %v970, %v969
        %v981 = vpack.c.b16 %v972, %v971
        %v982 = vpack.c.b16 %v974, %v973
        %991 = vmatpush.bf16.msra.mxu0 %v982
        %992 = vmatpush.bf16.msra.mxu0 %v981
        %993 = vmatpush.bf16.msra.mxu0 %v980
        %994 = vmatpush.bf16.msra.mxu0 %v979
        %995 = vmatpush.bf16.msra.mxu0 %v978
        %996 = vmatpush.bf16.msra.mxu0 %v977
        %997 = vmatpush.bf16.msra.mxu0 %v976
        %998 = vmatpush.bf16.msra.mxu0 %v975
        %999 = vmatmul.bf16.gmra.mxu0 %v939
        %v1000 = vpop.f32.mrf.mxu0
        %v1001 = vadd.f32 0.0, %v1000
        %v1002 = vpop.f32.mrf.mxu0
        %v1003 = vadd.f32 0.0, %v1002
        %1004 = vmatmul.bf16.gmra.mxu0 %v940
        %v1005 = vpop.f32.mrf.mxu0
        %v1006 = vadd.f32 0.0, %v1005
        %v1007 = vpop.f32.mrf.mxu0
        %v1008 = vadd.f32 0.0, %v1007
        %1009 = vdwg.mxu0
        %v1026 = vunpack.c.l.b16 %v899
        %v1027 = vunpack.c.l.b16 %v900
        %v1028 = vunpack.c.l.b16 %v901
        %v1029 = vunpack.c.l.b16 %v902
        %v1030 = vunpack.c.l.b16 %v903
        %v1031 = vunpack.c.l.b16 %v904
        %v1032 = vunpack.c.l.b16 %v905
        %v1033 = vunpack.c.l.b16 %v906
        %v1034 = vunpack.c.l.b16 %v907
        %v1035 = vunpack.c.l.b16 %v908
        %v1036 = vunpack.c.l.b16 %v909
        %v1037 = vunpack.c.l.b16 %v910
        %v1038 = vunpack.c.l.b16 %v911
        %v1039 = vunpack.c.l.b16 %v912
        %v1040 = vunpack.c.l.b16 %v913
        %v1041 = vunpack.c.l.b16 %v914
        %v1042 = vpack.c.b16 %v1027, %v1026
        %v1043 = vpack.c.b16 %v1029, %v1028
        %v1044 = vpack.c.b16 %v1031, %v1030
        %v1045 = vpack.c.b16 %v1033, %v1032
        %v1046 = vpack.c.b16 %v1035, %v1034
        %v1047 = vpack.c.b16 %v1037, %v1036
        %v1048 = vpack.c.b16 %v1039, %v1038
        %v1049 = vpack.c.b16 %v1041, %v1040
        %1058 = vmatpush.bf16.msra.mxu0 %v1049
        %1059 = vmatpush.bf16.msra.mxu0 %v1048
        %1060 = vmatpush.bf16.msra.mxu0 %v1047
        %1061 = vmatpush.bf16.msra.mxu0 %v1046
        %1062 = vmatpush.bf16.msra.mxu0 %v1045
        %1063 = vmatpush.bf16.msra.mxu0 %v1044
        %1064 = vmatpush.bf16.msra.mxu0 %v1043
        %1065 = vmatpush.bf16.msra.mxu0 %v1042
        %1066 = vmatmul.bf16.gmra.mxu0 %v897
        %v1067 = vpop.f32.mrf.mxu0
        %v1068 = vadd.f32 %v1001, %v1067
        %v1069 = vpop.f32.mrf.mxu0
        %v1070 = vadd.f32 %v1003, %v1069
        %1071 = vmatmul.bf16.gmra.mxu0 %v898
        %v1072 = vpop.f32.mrf.mxu0
        %v1073 = vadd.f32 %v1006, %v1072
        %v1074 = vpop.f32.mrf.mxu0
        %v1075 = vadd.f32 %v1008, %v1074
        %1076 = vdwg.mxu0
        %v1077 = vtanh.pop %v1068
        %v1078 = vtanh.pop %v1070
        %v1079 = vtanh.pop %v1073
        %v1080 = vtanh.pop %v1075
        %1081 = vst [vmem:[%s291] sm:$0xff] %v1077
        %1082 = vst [vmem:[%s291 + $0x8] sm:$0xff] %v1078
        %1083 = vst [vmem:[%s291 + $0x10] sm:$0xff] %v1079
        %1084 = vst [vmem:[%s291 + $0x18] sm:$0xff] %v1080
        %s1085 = sand.u32 %s163, 1
        %s1086 = scalar_lea.sflag [#allocation3], %s1085
        %s1087 = sand.u32 %s163, 1
        %s1088 = smul.addr %s1087, 32
        %s1089 = scalar_lea.vmem [#allocation2], %s1088
        %s1090 = sand.u32 %s191, 1
        %s1091 = scalar_lea.sflag [#allocation5], %s1090
        %s1092 = sand.u32 %s191, 1
        %s1093 = smul.addr %s1092, 16
        %s1094 = scalar_lea.vmem [#allocation4], %s1093
        // Predicated region
        $region41: #{cross_attention.1} parent=39 // pred_check
          %p1095 = pneg %p173
        $region42: #{cross_attention.1} parent=39 // pred_check_branch
          %1097 = sbr.rel (%p1095) target = $region44
        $region43: #{cross_attention.1} parent=39 // pred_region
          %s1098 = smul.u32 4, %s28
          %1100 = vsyncadd %s1086, 0
          %s1101 = sadd.s32 %s29, %s1098
          %s1102 = smul.addr %s1101, 8
          %s1103 = scalar_lea.hbm %s5, %s1102
          %s1104 = sshll.u32 %s1089, 4
          %s1105 = int_to_ptr.vmem [resolvable:$true] %s1104
          %s1106 = sshll.u32 %s1103, 4
          %s1107 = int_to_ptr.hbm [resolvable:$true] %s1106
          %1112 = dma.vmem_to_hbm [thread:$0]  %s1105, 512, %s1107, %s1086, 128, 128, 8
        $region44: #{cross_attention.1} parent=39 // pred_fallthru
          _
        // Predicated region
        $region45: #{cross_attention.1} parent=39 // pred_check
          %p1113 = pneg %p201
        $region46: #{cross_attention.1} parent=39 // pred_check_branch
          %1115 = sbr.rel (%p1113) target = $region48
        $region47: #{cross_attention.1} parent=39 // pred_region
          %s1116 = smul.u32 4, %s28
          %1118 = vsyncadd %s1091, 0
          %s1119 = sadd.s32 %s29, %s1116
          %s1120 = smul.addr %s1119, 4
          %s1121 = scalar_lea.hbm %s6, %s1120
          %s1122 = sshll.u32 %s1094, 4
          %s1123 = int_to_ptr.vmem [resolvable:$true] %s1122
          %s1124 = sshll.u32 %s1121, 4
          %s1125 = int_to_ptr.hbm [resolvable:$true] %s1124
          %1130 = dma.vmem_to_hbm [thread:$0]  %s1123, 256, %s1125, %s1091, 64, 64, 4
        $region48: #{cross_attention.1} parent=39 // pred_fallthru
          _
      $region40: #{cross_attention.1} parent=5 // pred_fallthru
        _
      %p1131 = scmp.le.s32.totalorder 2, %s19
      // Predicated region
      $region49: #{cross_attention.1} parent=5 // pred_check
        %p1132 = pneg %p1131
      $region50: #{cross_attention.1} parent=5 // pred_check_branch
        %1134 = sbr.rel (%p1132) target = $region52
      $region51: #{cross_attention.1} parent=5 // pred_region
        %s1135 = ssub.s32 %s19, 2
        // Predicated region
        $region53: #{cross_attention.1} parent=51 // pred_check
          %p1136 = pneg %p179
        $region54: #{cross_attention.1} parent=51 // pred_check_branch
          %1138 = sbr.rel (%p1136) target = $region56
        $region55: #{cross_attention.1} parent=51 // pred_region
          %s1139 = sand.u32 %s164, 1
          %s1140 = scalar_lea.sflag [#allocation3], %s1139
          %s1141 = sand.u32 %s164, 1
          %s1142 = smul.addr %s1141, 32
          %s1143 = scalar_lea.vmem [#allocation2], %s1142
          %1145 = dma.done %s1140, 512
        $region56: #{cross_attention.1} parent=51 // pred_fallthru
          _
        // Predicated region
        $region57: #{cross_attention.1} parent=51 // pred_check
          %p1146 = pneg %p207
        $region58: #{cross_attention.1} parent=51 // pred_check_branch
          %1148 = sbr.rel (%p1146) target = $region60
        $region59: #{cross_attention.1} parent=51 // pred_region
          %s1149 = sand.u32 %s192, 1
          %s1150 = scalar_lea.sflag [#allocation5], %s1149
          %s1151 = sand.u32 %s192, 1
          %s1152 = smul.addr %s1151, 16
          %s1153 = scalar_lea.vmem [#allocation4], %s1152
          %1155 = dma.done %s1150, 256
        $region60: #{cross_attention.1} parent=51 // pred_fallthru
          _
      $region52: #{cross_attention.1} parent=5 // pred_fallthru
        _
    $region6: #{cross_attention.1} parent=1 // loop_footer
      %s23 = sadd.s32 1, %s19
    $region7: #{cross_attention.1} parent=1 // loop_footer_branch
      %18 = sbr.rel target = $region3
    $region8: #{cross_attention.1} parent=1 // loop_exit
      _
    %1156 = vsyncpa [#allocation3], 1
    %s1157 = scalar_lea.sflag [#allocation3], 1
    %1158 = vsyncpa %s1157, 1
    %1159 = vsyncpa [#allocation5], 1
    %s1160 = scalar_lea.sflag [#allocation5], 1
    %1161 = vsyncpa %s1160, 1

</llo_original>
